<compile_context>
chip_gen: v7x
topology: tpu7x:2x2x1
jax: 0.10.0
libtpu: 0.0.40
codegen_flags: <defaults>
</compile_context>

<pallas_src>
import jax
import jax.numpy as jnp
from jax.experimental import pallas as pl
from jax.experimental.pallas import tpu as pltpu

_LANES = 128
_MAX_TILE_ROWS = 1024          # 1024 x 128 x 4B = 512 KiB per f32 tile (x2 for double buffer)
_GOLDEN = 0x9E3779B9


def _binary_source_kernel(seed_ref, out_ref):
    """Fill one (tile_rows, 128) output tile with iid Bernoulli(0.5) in {0, 1}.

    Counter-based hash: splitmix32-style mixing of (seed, global element index).
    Using the *global* index makes the stream independent of the tiling and of
    which TensorCore produced the tile, so per-tile re-seeding is never an issue.
    """
    tile_rows, lanes = out_ref.shape
    pid = jnp.asarray(pl.program_id(0), jnp.uint32)

    # Global element index of every output position in the padded slab.
    row = jax.lax.broadcasted_iota(jnp.int32, (tile_rows, lanes), 0).astype(jnp.uint32)
    col = jax.lax.broadcasted_iota(jnp.int32, (tile_rows, lanes), 1).astype(jnp.uint32)
    idx = pid * jnp.uint32(tile_rows * lanes) + row * jnp.uint32(lanes) + col

    # Mix in the seed, then splitmix32 finalizer (good avalanche -> bit 0 is an
    # unbiased, decorrelated coin flip).  All ops are cheap VPU int32 work that
    # hides completely under the HBM writeback of this memory-bound kernel.
    seed = seed_ref[0].astype(jnp.uint32)
    x = idx + seed * jnp.uint32(_GOLDEN)
    x = (x ^ (x >> 16)) * jnp.uint32(0x7FEB352D)
    x = (x ^ (x >> 15)) * jnp.uint32(0x846CA68B)
    x = x ^ (x >> 16)

    out_ref[...] = (x & jnp.uint32(1)).astype(jnp.int32).astype(out_ref.dtype)


def binary_source(shape, seed=12345, dtype=jnp.float32):
    """Pallas equivalent of BinarySource.forward.

    `shape` must be a static tuple/list of Python ints (JAX shapes are static;
    the torch module's `inputs.tolist()` plays the same role).
    `seed` mirrors the module: defaults to 12345 (the unseeded numpy branch).
    `dtype` may be narrowed (e.g. bfloat16 / int8) to halve/quarter HBM traffic.
    """
    shape = tuple(int(d) for d in shape)
    total = 1
    for d in shape:
        total *= d
    total = max(total, 1)

    rows = pl.cdiv(total, _LANES)
    rows = ((rows + 7) // 8) * 8                         # sublane-align to (8, 128)

    if rows <= _MAX_TILE_ROWS:
        tile_rows = rows                                 # small: one resident block, grid=(1,)
    else:
        tile_rows = _MAX_TILE_ROWS                       # large: pipelined 1-D grid
        rows = ((rows + tile_rows - 1) // tile_rows) * tile_rows

    grid = (rows // tile_rows,)
    seed_arr = jnp.asarray([seed], dtype=jnp.int32)

    slab = pl.pallas_call(
        _binary_source_kernel,
        out_shape=jax.ShapeDtypeStruct((rows, _LANES), dtype),
        grid=grid,
        in_specs=[pl.BlockSpec(memory_space=pltpu.MemorySpace.SMEM)],
        out_specs=pl.BlockSpec((tile_rows, _LANES), lambda i: (i, 0)),
        compiler_params=pltpu.CompilerParams(
            dimension_semantics=("parallel",),           # megacore sharding on v7x
            vmem_limit_bytes=32 * 1024 * 1024,           # small tiles: safe on v5e/v6e/v7x
        ),
    )(seed_arr)

    padded_total = rows * _LANES
    if padded_total == total:
        return slab.reshape(shape)                       # aligned: no extra slice/copy pass
    return slab.reshape(-1)[:total].reshape(shape)


if __name__ == "__main__":
    # Deterministic "inputs": the module's forward argument is a shape spec.
    key = jax.random.PRNGKey(0)
    inputs = jnp.array([2, 4, 16, 16], dtype=jnp.int32)  # requested output shape
    shape = tuple(int(d) for d in jax.device_get(inputs))

    # Unseeded branch of the module -> fixed internal seed 12345.
    out = jax.block_until_ready(binary_source(shape, seed=12345, dtype=jnp.float32))

    # Seeded branch: derive a deterministic seed from PRNGKey(0).
    seed2 = int(jax.device_get(jax.random.randint(key, (), 0, 2**31 - 1, jnp.int32)))
    out2 = jax.block_until_ready(binary_source(shape, seed=seed2, dtype=jnp.float32))

    # Same seed again: must be bit-identical (determinism per seed).
    out_again = jax.block_until_ready(binary_source(shape, seed=12345, dtype=jnp.float32))

    assert out.shape == (2, 4, 16, 16) and out.dtype == jnp.float32
    assert bool(jnp.all((out == 0.0) | (out == 1.0)))
    assert bool(jnp.all((out2 == 0.0) | (out2 == 1.0)))
    assert bool(jnp.any(out == 0.0)) and bool(jnp.any(out == 1.0))
    assert bool(jnp.array_equal(out, out_again))
    assert not bool(jnp.array_equal(out, out2))
    # TODO(synk): bit-exact reproduction of torch.Generator / numpy PCG64 streams
    # is not possible in-kernel; distribution (iid Bernoulli(0.5)) and
    # determinism-per-seed are preserved instead.
    print("KERNEL_OK")
</pallas_src>

<mosaic_0001>
module attributes {stable_mosaic.version = 11 : i64} {
  func.func @_binary_source_kernel(%arg0: i32, %arg1: memref<1xi32, #tpu.memory_space<smem>>, %arg2: memref<16x128xf32, #tpu.memory_space<vmem>>) attributes {dimension_semantics = [#tpu.dimension_semantics<parallel>], iteration_bounds = array<i64: 1>, scalar_prefetch = 0 : i64, scratch_operands = 0 : i64, tpu.core_type = #tpu.core_type<tc>, window_params = [{transform_indices = @transform_0, window_bounds = array<i64: 1>}, {transform_indices = @transform_1, window_bounds = array<i64: 16, 128>}]} {
    %0 = tpu.iota {dimensions = array<i32: 0>} : vector<16x128xi32>
    %1 = tpu.iota {dimensions = array<i32: 1>} : vector<16x128xi32>
    %c2048_i32 = arith.constant 2048 : i32
    %2 = arith.muli %arg0, %c2048_i32 : i32
    %c128_i32 = arith.constant 128 : i32
    %3 = vector.broadcast %c128_i32 : i32 to vector<16x128xi32>
    %4 = arith.muli %0, %3 : vector<16x128xi32>
    %5 = vector.broadcast %2 : i32 to vector<16x128xi32>
    %6 = arith.addi %5, %4 : vector<16x128xi32>
    %7 = arith.addi %6, %1 : vector<16x128xi32>
    %c0 = arith.constant 0 : index
    %8 = memref.load %arg1[%c0] : memref<1xi32, #tpu.memory_space<smem>>
    %c-1640531527_i32 = arith.constant -1640531527 : i32
    %9 = arith.muli %8, %c-1640531527_i32 : i32
    %10 = vector.broadcast %9 : i32 to vector<16x128xi32>
    %11 = arith.addi %7, %10 : vector<16x128xi32>
    %c16_i32 = arith.constant 16 : i32
    %12 = vector.broadcast %c16_i32 : i32 to vector<16x128xi32>
    %13 = arith.shrui %11, %12 : vector<16x128xi32>
    %14 = arith.xori %11, %13 : vector<16x128xi32>
    %c2146121005_i32 = arith.constant 2146121005 : i32
    %15 = vector.broadcast %c2146121005_i32 : i32 to vector<16x128xi32>
    %16 = arith.muli %14, %15 : vector<16x128xi32>
    %c15_i32 = arith.constant 15 : i32
    %17 = vector.broadcast %c15_i32 : i32 to vector<16x128xi32>
    %18 = arith.shrui %16, %17 : vector<16x128xi32>
    %19 = arith.xori %16, %18 : vector<16x128xi32>
    %c-2073254261_i32 = arith.constant -2073254261 : i32
    %20 = vector.broadcast %c-2073254261_i32 : i32 to vector<16x128xi32>
    %21 = arith.muli %19, %20 : vector<16x128xi32>
    %c16_i32_0 = arith.constant 16 : i32
    %22 = vector.broadcast %c16_i32_0 : i32 to vector<16x128xi32>
    %23 = arith.shrui %21, %22 : vector<16x128xi32>
    %24 = arith.xori %21, %23 : vector<16x128xi32>
    %c1_i32 = arith.constant 1 : i32
    %25 = vector.broadcast %c1_i32 : i32 to vector<16x128xi32>
    %26 = arith.andi %24, %25 : vector<16x128xi32>
    %27 = arith.sitofp %26 : vector<16x128xi32> to vector<16x128xf32>
    %c0_1 = arith.constant 0 : index
    %c0_2 = arith.constant 0 : index
    %28 = vector.load %arg2[%c0_1, %c0_2] : memref<16x128xf32, #tpu.memory_space<vmem>>, vector<16x128xf32>
    tpu.vector_store %arg2[%c0_1, %c0_2], %27 {strides = array<i32>} : memref<16x128xf32, #tpu.memory_space<vmem>>, vector<16x128xf32>,
    return
  }
  func.func @transform_0(%arg0: i32) -> i32 {
    %c0_i32 = arith.constant 0 : i32
    %c0_i32_0 = arith.constant 0 : i32
    return %c0_i32 : i32
  }
  func.func @transform_1(%arg0: i32) -> (i32, i32) {
    %c0_i32 = arith.constant 0 : i32
    %c0_i32_0 = arith.constant 0 : i32
    return %arg0, %c0_i32 : i32, i32
  }
}

</mosaic_0001>

<llo_original>
// kernel: tpu_custom_call.1
$region0: #{tpu_custom_call.1}
  #allocation0 [shape = 'u32[]', space=smem, size = 0x4, offset = 0x4, fixed_abs, tag = 'smem constant byte address 0x4 - core index']
  #allocation1 [shape = 'u32[144,128]{1,0:T(1,128)}', space=vmem, size = 0x12000, scoped, tag = 'internal scratch']
  #allocation2 [shape = 's32[1]{0:T(128)S(6)}', space=smem, size = 0x200, scoped, tag = 'scoped memory for tpu_custom_call.1']
  %s0 = inlined_call_operand.<no memory space> [shape: s32[1], index: 0, kind: input, shape index: {}]
  %s1 = inlined_call_operand.hbm [shape: f32[16,128], index: 1, kind: output, shape index: {}]
  %s2 = sld [smem:[#allocation0]]
  $region14: #{tpu_custom_call.1} parent=0
    _
  %s4 = ssub.s32 1, %s2
  %s5 = scalar_select 0, %s4, %s2
  %6 = sst [smem:[#allocation2]] %s0
  $region1: #{tpu_custom_call.1} parent=0
    #allocation3 [shape = 'u8[8192]{0}', space=vmem, size = 0x2000, scoped, tag = 'output window, operand 0, single buffered']
    #allocation4 [shape = 's32[1]{0}', space=sflag, size = 0x4, scoped, tag = 'scoped memory for tpu_custom_call.1']
    %7 = vsyncpa [#allocation4], 0
    // Predicated region
    $region2: #{tpu_custom_call.1} parent=1 // pred_check
      _
    $region3: #{tpu_custom_call.1} parent=1 // pred_check_branch
      %9 = sbr.rel (0) target = $region5
    $region4: #{tpu_custom_call.1} parent=1 // pred_region
      _
    $region5: #{tpu_custom_call.1} parent=1 // pred_fallthru
      _
    %v10 = vlaneseq
    %v11 = vshrl.u32 %v10, 7
    %v12 = vadd.s32 %v11, 8
    %v13 = vlaneseq
    %v14 = vand.u32 %v13, 127
    %s15 = smul.u32 0, 2048
    %v16 = vmul.u32 %v11, 128
    %v17 = vmul.u32 %v12, 128
    %v18 = vstv %s15
    %v19 = vadd.s32 %v18, %v16
    %v20 = vadd.s32 %v18, %v17
    %v21 = vadd.s32 %v19, %v14
    %v22 = vadd.s32 %v20, %v14
    %s23 = sld [smem:[#allocation2]]
    %s24 = smul.u32 %s23, 2654435769
    %v25 = vstv %s24
    %v26 = vadd.s32 %v21, %v25
    %v27 = vadd.s32 %v22, %v25
    %v28 = vshrl.u32 %v26, 16
    %v29 = vshrl.u32 %v27, 16
    %v30 = vxor.u32 %v26, %v28
    %v31 = vxor.u32 %v27, %v29
    %v32 = vmul.u32 %v30, 2146121005
    %v33 = vmul.u32 %v31, 2146121005
    %v34 = vshrl.u32 %v32, 15
    %v35 = vshrl.u32 %v33, 15
    %v36 = vxor.u32 %v32, %v34
    %v37 = vxor.u32 %v33, %v35
    %v38 = vmul.u32 %v36, 2221713035
    %v39 = vmul.u32 %v37, 2221713035
    %v40 = vshrl.u32 %v38, 16
    %v41 = vshrl.u32 %v39, 16
    %v42 = vxor.u32 %v38, %v40
    %v43 = vxor.u32 %v39, %v41
    %v44 = vand.u32 %v42, 1
    %v45 = vand.u32 %v43, 1
    %v46 = vcvt.s32.f32 %v44
    %v47 = vcvt.s32.f32 %v45
    %48 = vst [vmem:[#allocation3] sm:$0xff] %v46
    %49 = vst [vmem:[#allocation3 + $0x8] sm:$0xff] %v47
    // Predicated region
    $region6: #{tpu_custom_call.1} parent=1 // pred_check
      _
    $region7: #{tpu_custom_call.1} parent=1 // pred_check_branch
      %51 = sbr.rel (0) target = $region9
    $region8: #{tpu_custom_call.1} parent=1 // pred_region
      %s53 = ssub.s32 256, 256
      %54 = vsyncadd [#allocation4], %s53
      %s55 = sshll.u32 [#allocation3], 4
      %s56 = int_to_ptr.vmem [resolvable:$true] %s55
      %61 = dma.vmem_to_hbm [thread:$0]  %s56, 256, %s1, [#allocation4], 128, 128, 8
    $region9: #{tpu_custom_call.1} parent=1 // pred_fallthru
      _
    // Predicated region
    $region10: #{tpu_custom_call.1} parent=1 // pred_check
      _
    $region11: #{tpu_custom_call.1} parent=1 // pred_check_branch
      %63 = sbr.rel (0) target = $region13
    $region12: #{tpu_custom_call.1} parent=1 // pred_region
      %64 = dma.done [#allocation4], 256
    $region13: #{tpu_custom_call.1} parent=1 // pred_fallthru
      _
    %65 = vsyncpa [#allocation4], 1

</llo_original>
